<compile_context>
chip_gen: v7x
topology: tpu7x:2x2x1
jax: 0.10.0
libtpu: 0.0.40
codegen_flags: <defaults>
</compile_context>

<pallas_src>
import jax
import jax.numpy as jnp
from jax.experimental import pallas as pl
from jax.experimental.pallas import tpu as pltpu


def _mish_kernel(x_ref, o_ref):
    x = x_ref[...].astype(jnp.float32)
    # tanh(softplus(x)) = u / (u + 2),  u = e^x (e^x + 2).
    # Clamp at 20: for x >= 20 the ratio is 1.0 to f32 precision and the clamp
    # avoids inf arithmetic.
    t = jnp.exp(jnp.minimum(x, 20.0))
    u = t * (t + 2.0)
    d = u + 2.0
    r = pl.reciprocal(d, approx=True)   # EUP slot, nearly free
    r = r * (2.0 - d * r)               # Newton step 1 (VPU only)
    r = r * (2.0 - d * r)               # Newton step 2 -> ~full f32 accuracy
    o_ref[...] = (x * u * r).astype(o_ref.dtype)


def _mish_2d(x2d, block_rows):
    rows, w = x2d.shape
    grid = (pl.cdiv(rows, block_rows),)
    return pl.pallas_call(
        _mish_kernel,
        out_shape=jax.ShapeDtypeStruct((rows, w), x2d.dtype),
        grid_spec=pltpu.PrefetchScalarGridSpec(
            num_scalar_prefetch=0,
            grid=grid,
            in_specs=[pl.BlockSpec((block_rows, w), lambda i: (i, 0))],
            out_specs=pl.BlockSpec((block_rows, w), lambda i: (i, 0)),
        ),
        compiler_params=pltpu.CompilerParams(
            dimension_semantics=("parallel",),   # megacore sharding on v7x
        ),
    )(x2d)


def _mish_impl(x):
    orig_shape = x.shape
    n = x.size

    # Prefer a wide, lane-dense last dim (unmasked full-rate stores).
    PREF_W = 1024
    w = PREF_W if n % PREF_W == 0 else 128

    flat = x.reshape(-1)
    pad = (-n) % w
    if pad:
        flat = jnp.pad(flat, (0, pad))
    rows = flat.size // w
    x2d = flat.reshape(rows, w)

    # ~2 MiB f32 blocks; with default double buffering (2 in + 2 out bufs)
    # that's <= 8 MiB of VMEM — inside the default scoped-VMEM limit on
    # v5e / v6e / v7x, no vmem_limit_bytes override needed.
    target_rows = max(16, (2 * 1024 * 1024) // (w * 4))
    if rows <= target_rows:
        block_rows = rows                       # full-extent block (always legal)
    else:
        block_rows = (target_rows // 16) * 16   # multiple of 16: f32 & bf16 safe

    out2d = _mish_2d(x2d, block_rows)
    out = out2d.reshape(-1)
    if pad:
        out = out[:n]
    return out.reshape(orig_shape)


# jit so the (rare) pad / reshape / slice fuse around the pallas_call.
mish = jax.jit(_mish_impl)


if __name__ == "__main__":
    key = jax.random.PRNGKey(0)

    # Small NCHW input consistent with the Generator module.
    x = jax.random.normal(key, (2, 4, 16, 16), dtype=jnp.float32)
    y = mish(x)
    jax.block_until_ready(y)
    ref = x * jnp.tanh(jax.nn.softplus(x))
    assert y.shape == x.shape and y.dtype == x.dtype
    assert jnp.max(jnp.abs(y - ref)) < 1e-4

    # Larger input exercising the multi-step grid with a partial last block.
    x2 = jax.random.normal(jax.random.PRNGKey(1), (1300, 1024), dtype=jnp.float32) * 3.0
    y2 = mish(x2)
    jax.block_until_ready(y2)
    ref2 = x2 * jnp.tanh(jax.nn.softplus(x2))
    assert jnp.max(jnp.abs(y2 - ref2)) < 1e-4

    print("KERNEL_OK")
</pallas_src>

<mosaic_0001>
module attributes {stable_mosaic.version = 11 : i64} {
  func.func @_mish_kernel(%arg0: i32, %arg1: memref<2x1024xf32, #tpu.memory_space<vmem>>, %arg2: memref<2x1024xf32, #tpu.memory_space<vmem>>) attributes {dimension_semantics = [#tpu.dimension_semantics<parallel>], iteration_bounds = array<i64: 1>, scalar_prefetch = 0 : i64, scratch_operands = 0 : i64, tpu.core_type = #tpu.core_type<tc>, window_params = [{transform_indices = @transform_0, window_bounds = array<i64: 2, 1024>}, {transform_indices = @transform_1, window_bounds = array<i64: 2, 1024>}]} {
    %c0 = arith.constant 0 : index
    %c0_0 = arith.constant 0 : index
    %0 = vector.load %arg1[%c0, %c0_0] : memref<2x1024xf32, #tpu.memory_space<vmem>>, vector<2x1024xf32>
    %cst = arith.constant 2.000000e+01 : f32
    %1 = vector.broadcast %cst : f32 to vector<2x1024xf32>
    %2 = arith.minimumf %0, %1 : vector<2x1024xf32>
    %3 = math.exp %2 : vector<2x1024xf32>
    %cst_1 = arith.constant 2.000000e+00 : f32
    %4 = vector.broadcast %cst_1 : f32 to vector<2x1024xf32>
    %5 = arith.addf %3, %4 : vector<2x1024xf32>
    %6 = arith.mulf %3, %5 : vector<2x1024xf32>
    %cst_2 = arith.constant 2.000000e+00 : f32
    %7 = vector.broadcast %cst_2 : f32 to vector<2x1024xf32>
    %8 = arith.addf %6, %7 : vector<2x1024xf32>
    %9 = tpu.reciprocal %8 {approx = true} : vector<2x1024xf32> -> vector<2x1024xf32>
    %10 = arith.mulf %8, %9 : vector<2x1024xf32>
    %cst_3 = arith.constant 2.000000e+00 : f32
    %11 = vector.broadcast %cst_3 : f32 to vector<2x1024xf32>
    %12 = arith.subf %11, %10 : vector<2x1024xf32>
    %13 = arith.mulf %9, %12 : vector<2x1024xf32>
    %14 = arith.mulf %8, %13 : vector<2x1024xf32>
    %cst_4 = arith.constant 2.000000e+00 : f32
    %15 = vector.broadcast %cst_4 : f32 to vector<2x1024xf32>
    %16 = arith.subf %15, %14 : vector<2x1024xf32>
    %17 = arith.mulf %13, %16 : vector<2x1024xf32>
    %18 = arith.mulf %0, %6 : vector<2x1024xf32>
    %19 = arith.mulf %18, %17 : vector<2x1024xf32>
    %c0_5 = arith.constant 0 : index
    %c0_6 = arith.constant 0 : index
    %20 = vector.load %arg2[%c0_5, %c0_6] : memref<2x1024xf32, #tpu.memory_space<vmem>>, vector<2x1024xf32>
    tpu.vector_store %arg2[%c0_5, %c0_6], %19 {strides = array<i32>} : memref<2x1024xf32, #tpu.memory_space<vmem>>, vector<2x1024xf32>,
    return
  }
  func.func @transform_0(%arg0: i32) -> (i32, i32) {
    %c0_i32 = arith.constant 0 : i32
    %c0_i32_0 = arith.constant 0 : i32
    return %arg0, %c0_i32 : i32, i32
  }
  func.func @transform_1(%arg0: i32) -> (i32, i32) {
    %c0_i32 = arith.constant 0 : i32
    %c0_i32_0 = arith.constant 0 : i32
    return %arg0, %c0_i32 : i32, i32
  }
}

</mosaic_0001>

<llo_original>
// kernel: _mish_impl.1
$region0: #{_mish_impl.1}
  #allocation0 [shape = 'u32[]', space=smem, size = 0x4, offset = 0x4, fixed_abs, tag = 'smem constant byte address 0x4 - core index']
  #allocation1 [shape = 'u32[144,128]{1,0:T(1,128)}', space=vmem, size = 0x12000, scoped, tag = 'internal scratch']
  %s0 = inlined_call_operand.vmem [shape: f32[2,1024], index: 0, kind: input, shape index: {}]
  %s1 = inlined_call_operand.vmem [shape: f32[2,1024], index: 1, kind: output, shape index: {}]
  %s2 = sld [smem:[#allocation0]]
  $region14: #{_mish_impl.1} parent=0
    _
  %s4 = ssub.s32 1, %s2
  %s5 = scalar_select 0, %s4, %s2
  // Predicated region
  $region2: #{_mish_impl.1} parent=0 // pred_check
    _
  $region3: #{_mish_impl.1} parent=0 // pred_check_branch
    %7 = sbr.rel (0) target = $region5
  $region4: #{_mish_impl.1} parent=0 // pred_region
    _
  $region5: #{_mish_impl.1} parent=0 // pred_fallthru
    _
  %v8 = vld [vmem:[%s0] sm:$0xff]
  %v9 = vld [vmem:[%s0 + $0x8] sm:$0xff]
  %v10 = vmin.f32 %v8, 20.0
  %v11 = vmin.f32 %v9, 20.0
  %v12 = vmul.f32 %v10, 1.442695
  %v13 = vpow.pop %v12
  %v14 = vmul.f32 %v11, 1.442695
  %v15 = vpow.pop %v14
  %v16 = vadd.f32 %v13, 2.0
  %v17 = vadd.f32 %v15, 2.0
  %v18 = vmul.f32 %v13, %v16
  %v19 = vmul.f32 %v15, %v17
  %v20 = vadd.f32 %v18, 2.0
  %v21 = vadd.f32 %v19, 2.0
  %v22 = vrcp.pop %v20
  %v23 = vrcp.pop %v21
  %v24 = vmul.f32 %v20, %v22
  %v25 = vmul.f32 %v21, %v23
  %v26 = vsub.f32 2.0, %v24
  %v27 = vsub.f32 2.0, %v25
  %v28 = vmul.f32 %v22, %v26
  %v29 = vmul.f32 %v23, %v27
  %v30 = vmul.f32 %v20, %v28
  %v31 = vmul.f32 %v21, %v29
  %v32 = vsub.f32 2.0, %v30
  %v33 = vsub.f32 2.0, %v31
  %v34 = vmul.f32 %v28, %v32
  %v35 = vmul.f32 %v29, %v33
  %v36 = vmul.f32 %v8, %v18
  %v37 = vmul.f32 %v9, %v19
  %v38 = vmul.f32 %v36, %v34
  %v39 = vmul.f32 %v37, %v35
  %40 = vst [vmem:[%s1] sm:$0xff] %v38
  %41 = vst [vmem:[%s1 + $0x8] sm:$0xff] %v39
  // Predicated region
  $region6: #{_mish_impl.1} parent=0 // pred_check
    _
  $region7: #{_mish_impl.1} parent=0 // pred_check_branch
    %43 = sbr.rel (0) target = $region9
  $region8: #{_mish_impl.1} parent=0 // pred_region
    _
  $region9: #{_mish_impl.1} parent=0 // pred_fallthru
    _
  // Predicated region
  $region10: #{_mish_impl.1} parent=0 // pred_check
    _
  $region11: #{_mish_impl.1} parent=0 // pred_check_branch
    %45 = sbr.rel (0) target = $region13
  $region12: #{_mish_impl.1} parent=0 // pred_region
    _
  $region13: #{_mish_impl.1} parent=0 // pred_fallthru
    _

</llo_original>
